<compile_context>
chip_gen: v7x
topology: tpu7x:2x2x1
jax: 0.10.0
libtpu: 0.0.40
codegen_flags: <defaults>
</compile_context>

<pallas_src>
import functools

import jax
import jax.numpy as jnp
from jax.experimental import pallas as pl
from jax.experimental.pallas import tpu as pltpu

_LANE = 128
_SUBLANE = 8


def _norm_sq_kernel(x_ref, t_ref, out_ref, *, rows, blocks_per_core, need_mask):
    c = pl.program_id(0)   # core-split axis ("parallel")
    i = pl.program_id(1)   # reduction axis ("arbitrary")

    @pl.when(i == 0)
    def _():
        out_ref[...] = jnp.zeros_like(out_ref)

    # Cast right after load: HBM traffic stays in the storage dtype (e.g. bf16),
    # math runs in f32 (v5e has no bf16 VALU anyway).
    d = t_ref[...].astype(jnp.float32) - x_ref[...].astype(jnp.float32)
    sq = d * d

    if need_mask:
        # Mask rows past the logical end of the array.  The index_map clamps the
        # DMA to stay in bounds, so fully-out-of-range blocks re-read the last
        # valid block; the mask (computed from the UNclamped block index) zeroes
        # everything they contribute.
        tile_rows = x_ref.shape[0]
        row0 = (c * blocks_per_core + i) * tile_rows
        row_idx = row0 + jax.lax.broadcasted_iota(jnp.int32, sq.shape, 0)
        sq = jnp.where(row_idx < rows, sq, 0.0)

    # Lane-parallel partial sum: reduce only the sublane axis (VPU adds + one
    # small sublane reduce per step); no per-step cross-lane XLU reduce, no
    # per-step 1-element masked store.
    out_ref[...] += jnp.sum(sq, axis=0)[None, None, :]


def normal_loss(inputs, targets, *, tile_rows=1024):
    """L2 norm of (targets - inputs), both flattened. Returns a float32 scalar."""
    assert inputs.shape == targets.shape
    x = inputs.reshape(-1)
    t = targets.reshape(-1)
    n = x.shape[0]

    chunk = _SUBLANE * _LANE  # 1024
    pad = (-n) % chunk
    if pad:
        # Rare path (numel not a multiple of 1024): costs one extra HBM copy of
        # each input. Zero padding does not change the sum of squares.
        x = jnp.pad(x, (0, pad))
        t = jnp.pad(t, (0, pad))
    rows = (n + pad) // _LANE  # always a multiple of 8

    tile_rows = max(_SUBLANE, min(tile_rows, rows))
    tile_rows -= tile_rows % _SUBLANE

    num_blocks = pl.cdiv(rows, tile_rows)
    n_cores = 2  # v7x has 2 TensorCores; extra grid row is a cheap no-op elsewhere
    bpc = pl.cdiv(num_blocks, n_cores)
    need_mask = (n_cores * bpc * tile_rows) != rows

    def in_map(c, i):
        # Clamp so the DMA never reads past the array; kernel masks the rest.
        return (jnp.minimum(c * bpc + i, num_blocks - 1), 0)

    kernel = functools.partial(
        _norm_sq_kernel, rows=rows, blocks_per_core=bpc, need_mask=need_mask)

    partial_sq = pl.pallas_call(
        kernel,
        out_shape=jax.ShapeDtypeStruct((n_cores, 1, _LANE), jnp.float32),
        grid_spec=pltpu.PrefetchScalarGridSpec(
            num_scalar_prefetch=0,
            grid=(n_cores, bpc),
            in_specs=[
                pl.BlockSpec((tile_rows, _LANE), in_map),
                pl.BlockSpec((tile_rows, _LANE), in_map),
            ],
            out_specs=pl.BlockSpec((1, 1, _LANE), lambda c, i: (c, 0, 0)),
        ),
        compiler_params=pltpu.CompilerParams(
            dimension_semantics=("parallel", "arbitrary"),
        ),
    )(x.reshape(rows, _LANE), t.reshape(rows, _LANE))

    # Single cross-lane reduce + sqrt over 2*128 partial sums (tiny XLA epilogue).
    return jnp.sqrt(jnp.sum(partial_sq))


if __name__ == "__main__":
    key = jax.random.PRNGKey(0)
    k1, k2 = jax.random.split(key)
    # Small NCHW shapes consistent with the module's intended usage.
    inputs = jax.random.normal(k1, (2, 4, 16, 16), dtype=jnp.float32)
    targets = jax.random.normal(k2, (2, 4, 16, 16), dtype=jnp.float32)

    loss = jax.jit(normal_loss)(inputs, targets)
    jax.block_until_ready(loss)

    # Reference check (plain JAX).
    ref = jnp.linalg.norm((targets - inputs).reshape(-1))
    assert jnp.allclose(loss, ref, rtol=1e-5, atol=1e-5), (loss, ref)

    print("KERNEL_OK")
</pallas_src>

<mosaic_0001>
module attributes {stable_mosaic.version = 11 : i64} {
  func.func @_norm_sq_kernel(%arg0: i32, %arg1: i32, %arg2: memref<16x128xf32, #tpu.memory_space<vmem>>, %arg3: memref<16x128xf32, #tpu.memory_space<vmem>>, %arg4: memref<1x1x128xf32, #tpu.memory_space<vmem>>) attributes {dimension_semantics = [#tpu.dimension_semantics<parallel>, #tpu.dimension_semantics<arbitrary>], iteration_bounds = array<i64: 2, 1>, scalar_prefetch = 0 : i64, scratch_operands = 0 : i64, tpu.core_type = #tpu.core_type<tc>, window_params = [{transform_indices = @transform_0, window_bounds = array<i64: 16, 128>}, {transform_indices = @transform_1, window_bounds = array<i64: 16, 128>}, {transform_indices = @transform_2, window_bounds = array<i64: 1, 1, 128>}]} {
    %c0_i32 = arith.constant 0 : i32
    %0 = arith.cmpi eq, %arg1, %c0_i32 : i32
    %1 = arith.extui %0 : i1 to i32
    %c0_i32_0 = arith.constant 0 : i32
    %2 = arith.cmpi ne, %1, %c0_i32_0 : i32
    scf.if %2 {
      %cst_12 = arith.constant 0.000000e+00 : f32
      %22 = vector.broadcast %cst_12 : f32 to vector<1x1x128xf32>
      %c0_13 = arith.constant 0 : index
      %c0_14 = arith.constant 0 : index
      %c0_15 = arith.constant 0 : index
      %23 = vector.load %arg4[%c0_13, %c0_14, %c0_15] : memref<1x1x128xf32, #tpu.memory_space<vmem>>, vector<1x1x128xf32>
      tpu.vector_store %arg4[%c0_13, %c0_14, %c0_15], %22 {strides = array<i32>} : memref<1x1x128xf32, #tpu.memory_space<vmem>>, vector<1x1x128xf32>,
    } else {
    }
    %c0 = arith.constant 0 : index
    %c0_1 = arith.constant 0 : index
    %3 = vector.load %arg3[%c0, %c0_1] : memref<16x128xf32, #tpu.memory_space<vmem>>, vector<16x128xf32>
    %c0_2 = arith.constant 0 : index
    %c0_3 = arith.constant 0 : index
    %4 = vector.load %arg2[%c0_2, %c0_3] : memref<16x128xf32, #tpu.memory_space<vmem>>, vector<16x128xf32>
    %5 = arith.subf %3, %4 : vector<16x128xf32>
    %6 = arith.mulf %5, %5 : vector<16x128xf32>
    %c1_i32 = arith.constant 1 : i32
    %7 = arith.muli %arg0, %c1_i32 : i32
    %8 = arith.addi %7, %arg1 : i32
    %c16_i32 = arith.constant 16 : i32
    %9 = arith.muli %8, %c16_i32 : i32
    %10 = tpu.iota {dimensions = array<i32: 0>} : vector<16x128xi32>
    %11 = vector.broadcast %9 : i32 to vector<16x128xi32>
    %12 = arith.addi %11, %10 : vector<16x128xi32>
    %c16_i32_4 = arith.constant 16 : i32
    %13 = vector.broadcast %c16_i32_4 : i32 to vector<16x128xi32>
    %14 = arith.cmpi slt, %12, %13 : vector<16x128xi32>
    %cst = arith.constant 0.000000e+00 : f32
    %15 = vector.broadcast %cst : f32 to vector<16x128xf32>
    %16 = arith.select %14, %6, %15 : vector<16x128xi1>, vector<16x128xf32>
    %c0_5 = arith.constant 0 : index
    %c0_6 = arith.constant 0 : index
    %c0_7 = arith.constant 0 : index
    %17 = vector.load %arg4[%c0_5, %c0_6, %c0_7] : memref<1x1x128xf32, #tpu.memory_space<vmem>>, vector<1x1x128xf32>
    %cst_8 = arith.constant dense<0.000000e+00> : vector<128xf32>
    %18 = vector.multi_reduction <add>, %16, %cst_8 [0] : vector<16x128xf32> to vector<128xf32>
    %19 = vector.shape_cast %18 : vector<128xf32> to vector<1x1x128xf32>
    %20 = arith.addf %17, %19 : vector<1x1x128xf32>
    %c0_9 = arith.constant 0 : index
    %c0_10 = arith.constant 0 : index
    %c0_11 = arith.constant 0 : index
    %21 = vector.load %arg4[%c0_9, %c0_10, %c0_11] : memref<1x1x128xf32, #tpu.memory_space<vmem>>, vector<1x1x128xf32>
    tpu.vector_store %arg4[%c0_9, %c0_10, %c0_11], %20 {strides = array<i32>} : memref<1x1x128xf32, #tpu.memory_space<vmem>>, vector<1x1x128xf32>,
    return
  }
  func.func @transform_0(%arg0: i32, %arg1: i32) -> (i32, i32) {
    %c1_i32 = arith.constant 1 : i32
    %0 = arith.muli %arg0, %c1_i32 : i32
    %1 = arith.addi %0, %arg1 : i32
    %c0_i32 = arith.constant 0 : i32
    %2 = arith.minsi %1, %c0_i32 : i32
    %c0_i32_0 = arith.constant 0 : i32
    %c0_i32_1 = arith.constant 0 : i32
    return %2, %c0_i32_0 : i32, i32
  }
  func.func @transform_1(%arg0: i32, %arg1: i32) -> (i32, i32) {
    %c1_i32 = arith.constant 1 : i32
    %0 = arith.muli %arg0, %c1_i32 : i32
    %1 = arith.addi %0, %arg1 : i32
    %c0_i32 = arith.constant 0 : i32
    %2 = arith.minsi %1, %c0_i32 : i32
    %c0_i32_0 = arith.constant 0 : i32
    %c0_i32_1 = arith.constant 0 : i32
    return %2, %c0_i32_0 : i32, i32
  }
  func.func @transform_2(%arg0: i32, %arg1: i32) -> (i32, i32, i32) {
    %c0_i32 = arith.constant 0 : i32
    %c0_i32_0 = arith.constant 0 : i32
    %c0_i32_1 = arith.constant 0 : i32
    return %arg0, %c0_i32, %c0_i32_0 : i32, i32, i32
  }
}

</mosaic_0001>

<llo_original>
// kernel: normal_loss.1
$region0: #{normal_loss.1}
  #allocation0 [shape = 'u32[]', space=smem, size = 0x4, offset = 0x4, fixed_abs, tag = 'smem constant byte address 0x4 - core index']
  #allocation1 [shape = 'u32[144,128]{1,0:T(1,128)}', space=vmem, size = 0x12000, scoped, tag = 'internal scratch']
  %s0 = inlined_call_operand.vmem [shape: f32[16,128], index: 0, kind: input, shape index: {}]
  %s1 = inlined_call_operand.vmem [shape: f32[16,128], index: 1, kind: input, shape index: {}]
  %s2 = inlined_call_operand.vmem [shape: f32[2,1,128], index: 2, kind: output, shape index: {}]
  %s3 = sld [smem:[#allocation0]]
  $region45: #{normal_loss.1} parent=0
    _
  %s5 = ssub.s32 1, %s3
  %s6 = scalar_select 0, %s5, %s3
  loop: start=0, step=1, limit=4
  $region2: #{normal_loss.1} parent=0 // loop_pre_header
    _
  $region3: #{normal_loss.1} parent=0 // loop_header
    %s8 = sphi 0, %s12
    %p9 = scmp.ge.s32.totalorder %s8, 4
    %s15 = sphi 0, %s27
    %s16 = sphi 0, %s23
    %s17 = sphi 0, %s15
    %s18 = sphi 0, %s16
    %s19 = sphi 0, %s17
    %s20 = sphi 0, %s18
    %s36 = sphi 0, %s38
    %s39 = sphi 0, %s36
    %s40 = sphi 0, %s39
    %s56 = sphi 0, %s40
    %s68 = sphi 0, %s70
    %s71 = sphi 0, %s68
    %s72 = sphi 0, %s71
    %s88 = sphi 0, %s72
    %s94 = sphi 0, %s96
    %s97 = sphi 0, %s94
    %s98 = sphi 0, %s97
    %s114 = sphi 0, %s98
  $region4: #{normal_loss.1} parent=0 // loop_header_branch
    %11 = sbr.rel (%p9) target = $region8
  $region5: #{normal_loss.1} parent=0 // loop_body
    %s13 = ssub.s32 %s8, 1
    %s14 = ssub.s32 %s8, 2
    %s21 = sadd.s32 1, %s16
    %p22 = scmp.ge.s32.totalorder %s21, 1
    %s23 = scalar_select %p22, 0, %s21
    %s24 = sadd.s32 1, %s15
    %s25 = scalar_select %p22, %s24, %s15
    %p26 = scmp.ge.s32.totalorder %s25, 2
    %s27 = scalar_select %p26, 0, %s25
    %s28 = sadd.s32 %s15, %s16
    %p29 = scmp.lt.s32.totalorder %s28, 0
    %s30 = scalar_select %p29, %s28, 0
    %s31 = sadd.s32 %s27, %s23
    %p32 = scmp.lt.s32.totalorder %s31, 0
    %s33 = scalar_select %p32, %s31, 0
    %s34 = ssub.s32 %s30, %s33
    %p35 = scmp.eq.s32.totalorder %s34, 0
    %s37 = sadd.s32 %s36, 1
    %s38 = scalar_select %p35, %s36, %s37
    %p41 = pneg %p35
    %p42 = scmp.eq.s32.totalorder %s8, 1
    %p43 = por %p41, %p42
    %p44 = scmp.ne.s32.totalorder %s36, %s39
    %p45 = scmp.eq.s32.totalorder %s8, 0
    %p46 = por %p44, %p45
    %p47 = scmp.ne.s32.totalorder %s36, %s39
    %p48 = scmp.eq.s32.totalorder %s13, 1
    %p49 = por %p47, %p48
    %p50 = scmp.ne.s32.totalorder %s39, %s40
    %p51 = scmp.eq.s32.totalorder %s13, 0
    %p52 = por %p50, %p51
    %p53 = scmp.ne.s32.totalorder %s39, %s40
    %p54 = scmp.eq.s32.totalorder %s14, 1
    %p55 = por %p53, %p54
    %p57 = scmp.ne.s32.totalorder %s40, %s56
    %p58 = scmp.eq.s32.totalorder %s14, 0
    %p59 = por %p57, %p58
    %s60 = sadd.s32 %s15, %s16
    %p61 = scmp.lt.s32.totalorder %s60, 0
    %s62 = scalar_select %p61, %s60, 0
    %s63 = sadd.s32 %s27, %s23
    %p64 = scmp.lt.s32.totalorder %s63, 0
    %s65 = scalar_select %p64, %s63, 0
    %s66 = ssub.s32 %s62, %s65
    %p67 = scmp.eq.s32.totalorder %s66, 0
    %s69 = sadd.s32 %s68, 1
    %s70 = scalar_select %p67, %s68, %s69
    %p73 = pneg %p67
    %p74 = scmp.eq.s32.totalorder %s8, 1
    %p75 = por %p73, %p74
    %p76 = scmp.ne.s32.totalorder %s68, %s71
    %p77 = scmp.eq.s32.totalorder %s8, 0
    %p78 = por %p76, %p77
    %p79 = scmp.ne.s32.totalorder %s68, %s71
    %p80 = scmp.eq.s32.totalorder %s13, 1
    %p81 = por %p79, %p80
    %p82 = scmp.ne.s32.totalorder %s71, %s72
    %p83 = scmp.eq.s32.totalorder %s13, 0
    %p84 = por %p82, %p83
    %p85 = scmp.ne.s32.totalorder %s71, %s72
    %p86 = scmp.eq.s32.totalorder %s14, 1
    %p87 = por %p85, %p86
    %p89 = scmp.ne.s32.totalorder %s72, %s88
    %p90 = scmp.eq.s32.totalorder %s14, 0
    %p91 = por %p89, %p90
    %s92 = ssub.s32 %s15, %s27
    %p93 = scmp.eq.s32.totalorder %s92, 0
    %s95 = sadd.s32 %s94, 1
    %s96 = scalar_select %p93, %s94, %s95
    %p99 = pneg %p93
    %p100 = scmp.eq.s32.totalorder %s8, 1
    %p101 = por %p99, %p100
    %p102 = scmp.ne.s32.totalorder %s94, %s97
    %p103 = scmp.eq.s32.totalorder %s8, 0
    %p104 = por %p102, %p103
    %p105 = scmp.ne.s32.totalorder %s94, %s97
    %p106 = scmp.eq.s32.totalorder %s13, 1
    %p107 = por %p105, %p106
    %p108 = scmp.ne.s32.totalorder %s97, %s98
    %p109 = scmp.eq.s32.totalorder %s13, 0
    %p110 = por %p108, %p109
    %p111 = scmp.ne.s32.totalorder %s97, %s98
    %p112 = scmp.eq.s32.totalorder %s14, 1
    %p113 = por %p111, %p112
    %p115 = scmp.ne.s32.totalorder %s98, %s114
    %p116 = scmp.eq.s32.totalorder %s14, 0
    %p117 = por %p115, %p116
    %p118 = scmp.le.s32.totalorder 1, %s8
    %p119 = scmp.lt.s32.totalorder %s8, 3
    %p120 = pnand %p118, %p119
    %p121 = pneg %p120
    // Predicated region
    $region9: #{normal_loss.1} parent=5 // pred_check
      _
    $region10: #{normal_loss.1} parent=5 // pred_check_branch
      %123 = sbr.rel (%p120) target = $region12
    $region11: #{normal_loss.1} parent=5 // pred_region
      %s124 = ssub.s32 %s8, 1
    $region12: #{normal_loss.1} parent=5 // pred_fallthru
      _
    %p125 = scmp.lt.s32.totalorder %s8, 2
    // Predicated region
    $region13: #{normal_loss.1} parent=5 // pred_check
      %p126 = pneg %p125
    $region14: #{normal_loss.1} parent=5 // pred_check_branch
      %128 = sbr.rel (%p126) target = $region16
    $region15: #{normal_loss.1} parent=5 // pred_region
      // Predicated region
      $region17: #{normal_loss.1} parent=15 // pred_check
        %p129 = pneg %p46
      $region18: #{normal_loss.1} parent=15 // pred_check_branch
        %131 = sbr.rel (%p129) target = $region20
      $region19: #{normal_loss.1} parent=15 // pred_region
        %s132 = sadd.s32 %s15, %s16
        %p133 = scmp.lt.s32.totalorder %s132, 0
        %s134 = scalar_select %p133, %s132, 0
        %s135 = smul.u32 2, %s134
        %p136 = scmp.lt.s32.totalorder %s135, 1
        %s137 = scalar_select %p136, %s135, 1
        %s138 = smul.addr %s137, 8
        %s139 = scalar_lea.vmem %s0, %s138
        %s140 = sadd.s32 %s15, %s16
        %p141 = scmp.lt.s32.totalorder %s140, 0
        %s142 = scalar_select %p141, %s140, 0
        %s143 = smul.u32 2, %s142
      $region20: #{normal_loss.1} parent=15 // pred_fallthru
        _
      // Predicated region
      $region21: #{normal_loss.1} parent=15 // pred_check
        %p144 = pneg %p78
      $region22: #{normal_loss.1} parent=15 // pred_check_branch
        %146 = sbr.rel (%p144) target = $region24
      $region23: #{normal_loss.1} parent=15 // pred_region
        %s147 = sadd.s32 %s15, %s16
        %p148 = scmp.lt.s32.totalorder %s147, 0
        %s149 = scalar_select %p148, %s147, 0
        %s150 = smul.u32 2, %s149
        %p151 = scmp.lt.s32.totalorder %s150, 1
        %s152 = scalar_select %p151, %s150, 1
        %s153 = smul.addr %s152, 8
        %s154 = scalar_lea.vmem %s1, %s153
        %s155 = sadd.s32 %s15, %s16
        %p156 = scmp.lt.s32.totalorder %s155, 0
        %s157 = scalar_select %p156, %s155, 0
        %s158 = smul.u32 2, %s157
      $region24: #{normal_loss.1} parent=15 // pred_fallthru
        _
    $region16: #{normal_loss.1} parent=5 // pred_fallthru
      _
    %p159 = scmp.le.s32.totalorder 1, %s8
    %p160 = scmp.lt.s32.totalorder %s8, 3
    %p161 = pnand %p159, %p160
    %p162 = pneg %p161
    // Predicated region
    $region25: #{normal_loss.1} parent=5 // pred_check
      _
    $region26: #{normal_loss.1} parent=5 // pred_check_branch
      %164 = sbr.rel (%p161) target = $region28
    $region27: #{normal_loss.1} parent=5 // pred_region
      %s165 = ssub.s32 %s8, 1
      %s166 = sadd.s32 %s17, %s18
      %p167 = scmp.lt.s32.totalorder %s166, 0
      %s168 = scalar_select %p167, %s166, 0
      %s169 = smul.u32 2, %s168
      %p170 = scmp.lt.s32.totalorder %s169, 1
      %s171 = scalar_select %p170, %s169, 1
      %s172 = smul.addr %s171, 8
      %s173 = scalar_lea.vmem %s0, %s172
      %p174 = pneg %p52
      %p175 = pneg %p49
      %s176 = sadd.s32 %s17, %s18
      %p177 = scmp.lt.s32.totalorder %s176, 0
      %s178 = scalar_select %p177, %s176, 0
      %s179 = smul.u32 2, %s178
      %p180 = scmp.lt.s32.totalorder %s179, 1
      %s181 = scalar_select %p180, %s179, 1
      %s182 = smul.addr %s181, 8
      %s183 = scalar_lea.vmem %s1, %s182
      %p184 = pneg %p84
      %p185 = pneg %p81
      %p186 = pneg %p110
      %p187 = pneg %p107
      %p188 = scmp.lt.s32.totalorder %s17, 1
      %s189 = scalar_select %p188, %s17, 1
      %s190 = scalar_lea.vmem %s2, %s189
      %s191 = sadd.s32 %s17, %s18
      %p192 = scmp.lt.s32.totalorder %s191, 0
      %s193 = scalar_select %p192, %s191, 0
      %s194 = smul.u32 2, %s193
      %p195 = scmp.lt.s32.totalorder %s194, 1
      %s196 = scalar_select %p195, %s194, 1
      %s197 = smul.addr %s196, 8
      %s198 = scalar_lea.vmem %s0, %s197
      %s199 = sadd.s32 %s17, %s18
      %p200 = scmp.lt.s32.totalorder %s199, 0
      %s201 = scalar_select %p200, %s199, 0
      %s202 = smul.u32 2, %s201
      %s203 = sadd.s32 %s17, %s18
      %p204 = scmp.lt.s32.totalorder %s203, 0
      %s205 = scalar_select %p204, %s203, 0
      %s206 = smul.u32 2, %s205
      %p207 = scmp.lt.s32.totalorder %s206, 1
      %s208 = scalar_select %p207, %s206, 1
      %s209 = smul.addr %s208, 8
      %s210 = scalar_lea.vmem %s1, %s209
      %s211 = sadd.s32 %s17, %s18
      %p212 = scmp.lt.s32.totalorder %s211, 0
      %s213 = scalar_select %p212, %s211, 0
      %s214 = smul.u32 2, %s213
      %p215 = scmp.lt.s32.totalorder %s17, 1
      %s216 = scalar_select %p215, %s17, 1
      %s217 = scalar_lea.vmem %s2, %s216
      %p218 = scmp.eq.s32.totalorder %s18, 0
      // Predicated region
      $region29: #{normal_loss.1} parent=27 // pred_check
        %p219 = pneg %p218
      $region30: #{normal_loss.1} parent=27 // pred_check_branch
        %221 = sbr.rel (%p219) target = $region32
      $region31: #{normal_loss.1} parent=27 // pred_region
        %222 = vst [vmem:[%s217] sm:$0x1] 0.0
      $region32: #{normal_loss.1} parent=27 // pred_fallthru
        _
      %v223 = vld [vmem:[%s210] sm:$0xff]
      %v224 = vld [vmem:[%s210 + $0x8] sm:$0xff]
      %v225 = vld [vmem:[%s198] sm:$0xff]
      %v226 = vld [vmem:[%s198 + $0x8] sm:$0xff]
      %v227 = vsub.f32 %v223, %v225
      %v228 = vsub.f32 %v224, %v226
      %v229 = vmul.f32 %v227, %v227
      %v230 = vmul.f32 %v228, %v228
      %s231 = sadd.s32 %s17, %s18
      %s232 = smul.u32 %s231, 16
      %v233 = vlaneseq
      %v234 = vshrl.u32 %v233, 7
      %v235 = vadd.s32 %v234, 8
      %v236 = vstv %s232
      %v237 = vadd.s32 %v236, %v234
      %v238 = vadd.s32 %v236, %v235
      %vm239 = vcmp.lt.s32.totalorder %v237, 16
      %vm240 = vcmp.lt.s32.totalorder %v238, 16
      %v241 = vsel %vm239, %v229, 0.0
      %v242 = vsel %vm240, %v230, 0.0
      %v243 = vld [vmem:[%s217] sm:$0x1]
      %v244 = vadd.f32 %v241, %v242
      %v245 = vrot.slane %v244, 4
      %v246 = vadd.f32 %v244, %v245
      %v247 = vrot.slane %v246, 2
      %v248 = vadd.f32 %v246, %v247
      %v249 = vrot.slane %v248, 1
      %v250 = vadd.f32 %v248, %v249
      %v251 = vadd.f32 %v243, %v250
      %252 = vst [vmem:[%s217] sm:$0x1] %v251
      %p253 = scmp.lt.s32.totalorder %s17, 1
      %s254 = scalar_select %p253, %s17, 1
      %s255 = scalar_lea.vmem %s2, %s254
      // Predicated region
      $region33: #{normal_loss.1} parent=27 // pred_check
        %p256 = pneg %p107
      $region34: #{normal_loss.1} parent=27 // pred_check_branch
        %258 = sbr.rel (%p256) target = $region36
      $region35: #{normal_loss.1} parent=27 // pred_region
        _
      $region36: #{normal_loss.1} parent=27 // pred_fallthru
        _
    $region28: #{normal_loss.1} parent=5 // pred_fallthru
      _
    %p259 = scmp.le.s32.totalorder 2, %s8
    // Predicated region
    $region37: #{normal_loss.1} parent=5 // pred_check
      %p260 = pneg %p259
    $region38: #{normal_loss.1} parent=5 // pred_check_branch
      %262 = sbr.rel (%p260) target = $region40
    $region39: #{normal_loss.1} parent=5 // pred_region
      %s263 = ssub.s32 %s8, 2
      // Predicated region
      $region41: #{normal_loss.1} parent=39 // pred_check
        %p264 = pneg %p113
      $region42: #{normal_loss.1} parent=39 // pred_check_branch
        %266 = sbr.rel (%p264) target = $region44
      $region43: #{normal_loss.1} parent=39 // pred_region
        %p267 = scmp.lt.s32.totalorder %s19, 1
        %s268 = scalar_select %p267, %s19, 1
        %s269 = scalar_lea.vmem %s2, %s268
      $region44: #{normal_loss.1} parent=39 // pred_fallthru
        _
    $region40: #{normal_loss.1} parent=5 // pred_fallthru
      _
  $region6: #{normal_loss.1} parent=0 // loop_footer
    %s12 = sadd.s32 1, %s8
  $region7: #{normal_loss.1} parent=0 // loop_footer_branch
    %7 = sbr.rel target = $region3
  $region8: #{normal_loss.1} parent=0 // loop_exit
    _

</llo_original>
